<compile_context>
chip_gen: v5e
topology: v5e:2x2
jax: 0.10.0
libtpu: 0.0.40
codegen_flags: <defaults>
</compile_context>

<pallas_src>
import functools

import jax
import jax.numpy as jnp
from jax.experimental import pallas as pl
from jax.experimental.pallas import tpu as pltpu


def _logistic_loss_kernel(rep_a_ref, rep_b_ref, labels_ref, wu_ref, wv_ref,
                          wd_ref, bias_ref, out_ref, *,
                          batch, tile_b, tiles_per_core, d):
    c = pl.program_id(0)   # megacore ("parallel") axis: which partial sum
    i = pl.program_id(1)   # batch-tile ("arbitrary") axis: sequential reduction

    # The output block (1, 8, 128) has a constant index along the tile axis, so
    # it stays resident in VMEM across the reduction -> per-core accumulator.
    @pl.when(i == 0)
    def _():
        out_ref[...] = jnp.zeros_like(out_ref)

    u = rep_a_ref[...].astype(jnp.float32)                 # (TB, D)
    v = rep_b_ref[...].astype(jnp.float32)                 # (TB, D)
    wu = wu_ref[...].astype(jnp.float32)                   # (1, D) sublane-bcast
    wv = wv_ref[...].astype(jnp.float32)                   # (1, D)
    wd = wd_ref[...].astype(jnp.float32)                   # (1, D)

    # VPU multiply-accumulate instead of concat + (B,3D)x(3D,1) MXU matmul.
    t = u * wu + v * wv + jnp.abs(u - v) * wd              # (TB, D)

    # Explicit lane-blocked reduce: VALU adds of the D/128 lane-vreg columns,
    # then a single XLU cross-lane reduce.
    if d % 128 == 0 and d > 128:
        part = t[:, 0:128]
        for kk in range(1, d // 128):
            part = part + t[:, kk * 128:(kk + 1) * 128]
    else:
        part = t
    z = jnp.sum(part, axis=-1, keepdims=True) + bias_ref[0]    # (TB, 1)

    y = labels_ref[...].astype(jnp.float32)                    # (TB, 1)

    # Numerically stable BCEWithLogitsLoss elementwise term (PyTorch semantics):
    #   max(z, 0) - z*y + log(1 + exp(-|z|))
    per = jnp.maximum(z, 0.0) - z * y + jnp.log1p(jnp.exp(-jnp.abs(z)))

    # Mask the garbage tail of a ragged trailing block and this core's overhang
    # tiles (their block index is clamped in the index_map so the DMA stays
    # in-bounds, but their global rows are >= batch and must contribute zero).
    g = c * tiles_per_core + i                                  # global tile idx
    row = g * tile_b + jax.lax.broadcasted_iota(jnp.int32, (tile_b, 1), 0)
    per = jnp.where(row < batch, per, 0.0)

    out_ref[...] += jnp.sum(per)   # scalar broadcast into the lane-dense block


def _pick_tile_and_vmem_limit(batch, d, itemsize):
    """Derive the batch tile from the per-generation VMEM budget.

    v7x: 64 MiB physical / 32 MiB default scoped; v5e/v6e: 128 MiB physical /
    16-32 MiB default scoped.  We raise the scoped limit and give the two
    double-buffered embedding inputs ~1/3 of it (rest: f32 temps + slack).
    """
    try:
        cap = int(getattr(pltpu.get_tpu_info(), "vmem_capacity_bytes",
                          64 * 1024 * 1024))
    except Exception:   # query unavailable -> assume the smallest (v7x) VMEM
        cap = 64 * 1024 * 1024
    vmem_limit = max(32 * 1024 * 1024, min(int(cap * 0.6), 96 * 1024 * 1024))
    input_budget = vmem_limit // 3
    tb = input_budget // (2 * 2 * d * itemsize)   # 2 inputs x 2 pipeline buffers
    tb = max(8, min(tb, 2048, ((batch + 7) // 8) * 8))
    tb = (tb // 8) * 8
    return tb, vmem_limit


def logistic_loss(rep_a, rep_b, weight, bias, labels, *, block_b=None):
    """rep_a, rep_b: (B, D) sentence embeddings (f32, or bf16 from the producer).
    weight: (1, 3*D) torch nn.Linear layout (out_features, in_features).
    bias:   (1,).  labels: (B,) floats in {0, 1}."""
    B, D = rep_a.shape
    L = weight.shape[0]
    assert L == 1, "kernel implements the module default num_labels == 1"
    assert weight.shape == (1, 3 * D)
    # TODO(synk): num_labels > 1 would contract three lane-dense (L, D) weight
    # chunks against the embedding tiles on the MXU instead of the VPU reduce.

    # Split W into its u / v / |u-v| chunks: three lane-dense (1, D) rows
    # (avoids the 8-sublane-padded (3, D) tile and per-step sublane slicing).
    w_u = weight[:, 0:D]
    w_v = weight[:, D:2 * D]
    w_d = weight[:, 2 * D:3 * D]
    bias_s = bias.reshape(1).astype(jnp.float32)
    labels_2d = labels.reshape(B, 1).astype(jnp.float32)

    itemsize = jnp.dtype(rep_a.dtype).itemsize
    tb, vmem_limit = _pick_tile_and_vmem_limit(B, D, itemsize)
    if block_b is not None:   # explicit override (testing / tuning)
        tb = max(8, (min(block_b, ((B + 7) // 8) * 8) // 8) * 8)

    num_tiles = pl.cdiv(B, tb)          # no padding: trailing block is partial
    num_cores = 2                       # v7x megacore; runs serially on 1-TC chips
    tiles_per_core = pl.cdiv(num_tiles, num_cores)

    def emb_map(c, i):
        # Contiguous tile range per core; clamp the last core's overhang tiles
        # so their DMA stays in bounds (their rows are masked in-kernel).
        return (jnp.minimum(c * tiles_per_core + i, num_tiles - 1), 0)

    kernel = functools.partial(_logistic_loss_kernel, batch=B, tile_b=tb,
                               tiles_per_core=tiles_per_core, d=D)

    cost = pl.CostEstimate(
        flops=8 * B * D + 8 * B,
        transcendentals=2 * B,
        bytes_accessed=(2 * B * D * itemsize + 4 * B
                        + 3 * D * jnp.dtype(weight.dtype).itemsize + 16),
    )

    partials = pl.pallas_call(
        kernel,
        out_shape=jax.ShapeDtypeStruct((num_cores, 8, 128), jnp.float32),
        grid_spec=pltpu.PrefetchScalarGridSpec(
            num_scalar_prefetch=0,
            grid=(num_cores, tiles_per_core),
            in_specs=[
                pl.BlockSpec((tb, D), emb_map),                      # rep_a tile
                pl.BlockSpec((tb, D), emb_map),                      # rep_b tile
                pl.BlockSpec((tb, 1), emb_map),                      # labels tile
                pl.BlockSpec((1, D), lambda c, i: (0, 0)),           # w_u
                pl.BlockSpec((1, D), lambda c, i: (0, 0)),           # w_v
                pl.BlockSpec((1, D), lambda c, i: (0, 0)),           # w_diff
                pl.BlockSpec(memory_space=pltpu.MemorySpace.SMEM),   # bias scalar
            ],
            # Lane-dense per-core partial-sum block, indexed by the parallel axis.
            out_specs=pl.BlockSpec((1, 8, 128), lambda c, i: (c, 0, 0)),
        ),
        compiler_params=pltpu.CompilerParams(
            dimension_semantics=("parallel", "arbitrary"),
            vmem_limit_bytes=int(vmem_limit)),
        cost_estimate=cost,
    )(rep_a, rep_b, labels_2d, w_u, w_v, w_d, bias_s)

    # Sum the two per-core partials; mean over B * num_labels elements.
    return jnp.sum(partials[:, 0, 0]) * jnp.float32(1.0 / (B * L))


if __name__ == "__main__":
    def ref_loss(a, b, w, bi, y):
        # Pure-JAX reference (torch semantics: feats @ W.T + b, BCEWithLogits mean)
        feats = jnp.concatenate([a, b, jnp.abs(a - b)], axis=1)
        z = (feats @ w.T + bi).reshape(-1)
        return jnp.mean(jnp.maximum(z, 0.0) - z * y + jnp.log1p(jnp.exp(-jnp.abs(z))))

    # ---- main check: module-default small shapes ---------------------------
    B = 8          # batch (sentence pairs)
    D = 32         # sentence embedding dimension
    NUM_LABELS = 1 # module default
    F_IN = 3 * D   # concat([u, v, |u-v|])

    key = jax.random.PRNGKey(0)
    k_a, k_b, k_w, k_bias, k_lbl = jax.random.split(key, 5)
    rep_a = jax.random.normal(k_a, (B, D), dtype=jnp.float32)
    rep_b = jax.random.normal(k_b, (B, D), dtype=jnp.float32)
    bound = 1.0 / (F_IN ** 0.5)
    weight = jax.random.uniform(k_w, (NUM_LABELS, F_IN), jnp.float32, -bound, bound)
    bias = jax.random.uniform(k_bias, (NUM_LABELS,), jnp.float32, -bound, bound)
    labels = jax.random.bernoulli(k_lbl, 0.5, (B * NUM_LABELS,)).astype(jnp.float32)

    loss = logistic_loss(rep_a, rep_b, weight, bias, labels)
    jax.block_until_ready(loss)
    ref = ref_loss(rep_a, rep_b, weight, bias, labels)
    assert jnp.allclose(loss, ref, atol=1e-5, rtol=1e-5), (loss, ref)

    # ---- ragged batch: exercises partial trailing block, multi-tile
    # accumulation and the per-core partial-sum path (no wrapper padding) -----
    B2, D2 = 37, 256
    F2 = 3 * D2
    k_a2, k_b2, k_w2, k_bias2, k_lbl2 = jax.random.split(jax.random.PRNGKey(0), 5)
    rep_a2 = jax.random.normal(k_a2, (B2, D2), dtype=jnp.float32)
    rep_b2 = jax.random.normal(k_b2, (B2, D2), dtype=jnp.float32)
    bound2 = 1.0 / (F2 ** 0.5)
    weight2 = jax.random.uniform(k_w2, (1, F2), jnp.float32, -bound2, bound2)
    bias2 = jax.random.uniform(k_bias2, (1,), jnp.float32, -bound2, bound2)
    labels2 = jax.random.bernoulli(k_lbl2, 0.5, (B2,)).astype(jnp.float32)

    loss2 = logistic_loss(rep_a2, rep_b2, weight2, bias2, labels2, block_b=16)
    jax.block_until_ready(loss2)
    ref2 = ref_loss(rep_a2, rep_b2, weight2, bias2, labels2)
    assert jnp.allclose(loss2, ref2, atol=1e-5, rtol=1e-5), (loss2, ref2)

    print("KERNEL_OK")
</pallas_src>

<mosaic_0001>
module attributes {stable_mosaic.version = 11 : i64} {
  func.func @_logistic_loss_kernel(%arg0: i32, %arg1: i32, %arg2: memref<8x32xf32, #tpu.memory_space<vmem>>, %arg3: memref<8x32xf32, #tpu.memory_space<vmem>>, %arg4: memref<8x1xf32, #tpu.memory_space<vmem>>, %arg5: memref<1x32xf32, #tpu.memory_space<vmem>>, %arg6: memref<1x32xf32, #tpu.memory_space<vmem>>, %arg7: memref<1x32xf32, #tpu.memory_space<vmem>>, %arg8: memref<1xf32, #tpu.memory_space<smem>>, %arg9: memref<1x8x128xf32, #tpu.memory_space<vmem>>) attributes {dimension_semantics = [#tpu.dimension_semantics<parallel>, #tpu.dimension_semantics<arbitrary>], iteration_bounds = array<i64: 2, 1>, scalar_prefetch = 0 : i64, scratch_operands = 0 : i64, tpu.core_type = #tpu.core_type<tc>, window_params = [{transform_indices = @transform_0, window_bounds = array<i64: 8, 32>}, {transform_indices = @transform_1, window_bounds = array<i64: 8, 32>}, {transform_indices = @transform_2, window_bounds = array<i64: 8, 1>}, {pipeline_mode = #tpu.pipeline_mode<synchronous>, transform_indices = @transform_3, window_bounds = array<i64: 1, 32>}, {pipeline_mode = #tpu.pipeline_mode<synchronous>, transform_indices = @transform_4, window_bounds = array<i64: 1, 32>}, {pipeline_mode = #tpu.pipeline_mode<synchronous>, transform_indices = @transform_5, window_bounds = array<i64: 1, 32>}, {transform_indices = @transform_6, window_bounds = array<i64: 1>}, {transform_indices = @transform_7, window_bounds = array<i64: 1, 8, 128>}]} {
    %c0_i32 = arith.constant 0 : i32
    %0 = arith.cmpi eq, %arg1, %c0_i32 : i32
    %1 = arith.extui %0 : i1 to i32
    %c0_i32_0 = arith.constant 0 : i32
    %2 = arith.cmpi ne, %1, %c0_i32_0 : i32
    scf.if %2 {
      %cst_24 = arith.constant 0.000000e+00 : f32
      %52 = vector.broadcast %cst_24 : f32 to vector<1x8x128xf32>
      %c0_25 = arith.constant 0 : index
      %c0_26 = arith.constant 0 : index
      %c0_27 = arith.constant 0 : index
      %53 = vector.load %arg9[%c0_25, %c0_26, %c0_27] : memref<1x8x128xf32, #tpu.memory_space<vmem>>, vector<1x8x128xf32>
      tpu.vector_store %arg9[%c0_25, %c0_26, %c0_27], %52 {strides = array<i32>} : memref<1x8x128xf32, #tpu.memory_space<vmem>>, vector<1x8x128xf32>,
    } else {
    }
    %c0 = arith.constant 0 : index
    %c0_1 = arith.constant 0 : index
    %3 = vector.load %arg2[%c0, %c0_1] : memref<8x32xf32, #tpu.memory_space<vmem>>, vector<8x32xf32>
    %c0_2 = arith.constant 0 : index
    %c0_3 = arith.constant 0 : index
    %4 = vector.load %arg3[%c0_2, %c0_3] : memref<8x32xf32, #tpu.memory_space<vmem>>, vector<8x32xf32>
    %c0_4 = arith.constant 0 : index
    %c0_5 = arith.constant 0 : index
    %5 = vector.load %arg5[%c0_4, %c0_5] : memref<1x32xf32, #tpu.memory_space<vmem>>, vector<1x32xf32>
    %c0_6 = arith.constant 0 : index
    %c0_7 = arith.constant 0 : index
    %6 = vector.load %arg6[%c0_6, %c0_7] : memref<1x32xf32, #tpu.memory_space<vmem>>, vector<1x32xf32>
    %c0_8 = arith.constant 0 : index
    %c0_9 = arith.constant 0 : index
    %7 = vector.load %arg7[%c0_8, %c0_9] : memref<1x32xf32, #tpu.memory_space<vmem>>, vector<1x32xf32>
    %8 = vector.broadcast %5 : vector<1x32xf32> to vector<8x32xf32>
    %9 = arith.mulf %3, %8 : vector<8x32xf32>
    %10 = vector.broadcast %6 : vector<1x32xf32> to vector<8x32xf32>
    %11 = arith.mulf %4, %10 : vector<8x32xf32>
    %12 = arith.addf %9, %11 : vector<8x32xf32>
    %13 = arith.subf %3, %4 : vector<8x32xf32>
    %14 = math.absf %13 : vector<8x32xf32>
    %15 = vector.broadcast %7 : vector<1x32xf32> to vector<8x32xf32>
    %16 = arith.mulf %14, %15 : vector<8x32xf32>
    %17 = arith.addf %12, %16 : vector<8x32xf32>
    %cst = arith.constant dense<0.000000e+00> : vector<8xf32>
    %18 = vector.multi_reduction <add>, %17, %cst [1] : vector<8x32xf32> to vector<8xf32>
    %19 = vector.shape_cast %18 : vector<8xf32> to vector<8x1xf32>
    %c0_10 = arith.constant 0 : index
    %20 = memref.load %arg8[%c0_10] : memref<1xf32, #tpu.memory_space<smem>>
    %21 = vector.broadcast %20 : f32 to vector<8x1xf32>
    %22 = arith.addf %19, %21 : vector<8x1xf32>
    %c0_11 = arith.constant 0 : index
    %c0_12 = arith.constant 0 : index
    %23 = vector.load %arg4[%c0_11, %c0_12] : memref<8x1xf32, #tpu.memory_space<vmem>>, vector<8x1xf32>
    %cst_13 = arith.constant 0.000000e+00 : f32
    %24 = vector.broadcast %cst_13 : f32 to vector<8x1xf32>
    %25 = arith.maximumf %22, %24 : vector<8x1xf32>
    %26 = arith.mulf %22, %23 : vector<8x1xf32>
    %27 = arith.subf %25, %26 : vector<8x1xf32>
    %28 = math.absf %22 : vector<8x1xf32>
    %cst_14 = arith.constant 0.000000e+00 : f32
    %29 = vector.broadcast %cst_14 : f32 to vector<8x1xf32>
    %30 = arith.subf %29, %28 : vector<8x1xf32>
    %31 = math.exp %30 : vector<8x1xf32>
    %32 = math.log1p %31 : vector<8x1xf32>
    %33 = arith.addf %27, %32 : vector<8x1xf32>
    %c1_i32 = arith.constant 1 : i32
    %34 = arith.muli %arg0, %c1_i32 : i32
    %35 = arith.addi %34, %arg1 : i32
    %c8_i32 = arith.constant 8 : i32
    %36 = arith.muli %35, %c8_i32 : i32
    %37 = tpu.iota {dimensions = array<i32: 0>} : vector<8x1xi32>
    %38 = vector.broadcast %36 : i32 to vector<8x1xi32>
    %39 = arith.addi %38, %37 : vector<8x1xi32>
    %c8_i32_15 = arith.constant 8 : i32
    %40 = vector.broadcast %c8_i32_15 : i32 to vector<8x1xi32>
    %41 = arith.cmpi slt, %39, %40 : vector<8x1xi32>
    %cst_16 = arith.constant 0.000000e+00 : f32
    %42 = vector.broadcast %cst_16 : f32 to vector<8x1xf32>
    %43 = arith.select %41, %33, %42 : vector<8x1xi1>, vector<8x1xf32>
    %c0_17 = arith.constant 0 : index
    %c0_18 = arith.constant 0 : index
    %c0_19 = arith.constant 0 : index
    %44 = vector.load %arg9[%c0_17, %c0_18, %c0_19] : memref<1x8x128xf32, #tpu.memory_space<vmem>>, vector<1x8x128xf32>
    %45 = vector.shape_cast %43 : vector<8x1xf32> to vector<1x8x1xf32>
    %cst_20 = arith.constant dense<0.000000e+00> : vector<1xf32>
    %46 = vector.multi_reduction <add>, %45, %cst_20 [1, 2] : vector<1x8x1xf32> to vector<1xf32>
    %47 = vector.shape_cast %46 : vector<1xf32> to vector<1x1x1xf32>
    %48 = vector.extract %47[0, 0, 0] : f32 from vector<1x1x1xf32>
    %49 = vector.broadcast %48 : f32 to vector<1x8x128xf32>
    %50 = arith.addf %44, %49 : vector<1x8x128xf32>
    %c0_21 = arith.constant 0 : index
    %c0_22 = arith.constant 0 : index
    %c0_23 = arith.constant 0 : index
    %51 = vector.load %arg9[%c0_21, %c0_22, %c0_23] : memref<1x8x128xf32, #tpu.memory_space<vmem>>, vector<1x8x128xf32>
    tpu.vector_store %arg9[%c0_21, %c0_22, %c0_23], %50 {strides = array<i32>} : memref<1x8x128xf32, #tpu.memory_space<vmem>>, vector<1x8x128xf32>,
    return
  }
  func.func @transform_0(%arg0: i32, %arg1: i32) -> (i32, i32) {
    %c1_i32 = arith.constant 1 : i32
    %0 = arith.muli %arg0, %c1_i32 : i32
    %1 = arith.addi %0, %arg1 : i32
    %c0_i32 = arith.constant 0 : i32
    %2 = arith.minsi %1, %c0_i32 : i32
    %c0_i32_0 = arith.constant 0 : i32
    %c0_i32_1 = arith.constant 0 : i32
    return %2, %c0_i32_0 : i32, i32
  }
  func.func @transform_1(%arg0: i32, %arg1: i32) -> (i32, i32) {
    %c1_i32 = arith.constant 1 : i32
    %0 = arith.muli %arg0, %c1_i32 : i32
    %1 = arith.addi %0, %arg1 : i32
    %c0_i32 = arith.constant 0 : i32
    %2 = arith.minsi %1, %c0_i32 : i32
    %c0_i32_0 = arith.constant 0 : i32
    %c0_i32_1 = arith.constant 0 : i32
    return %2, %c0_i32_0 : i32, i32
  }
  func.func @transform_2(%arg0: i32, %arg1: i32) -> (i32, i32) {
    %c1_i32 = arith.constant 1 : i32
    %0 = arith.muli %arg0, %c1_i32 : i32
    %1 = arith.addi %0, %arg1 : i32
    %c0_i32 = arith.constant 0 : i32
    %2 = arith.minsi %1, %c0_i32 : i32
    %c0_i32_0 = arith.constant 0 : i32
    %c0_i32_1 = arith.constant 0 : i32
    return %2, %c0_i32_0 : i32, i32
  }
  func.func @transform_3(%arg0: i32, %arg1: i32) -> (i32, i32) {
    %c0_i32 = arith.constant 0 : i32
    %c0_i32_0 = arith.constant 0 : i32
    %c0_i32_1 = arith.constant 0 : i32
    return %c0_i32, %c0_i32_0 : i32, i32
  }
  func.func @transform_4(%arg0: i32, %arg1: i32) -> (i32, i32) {
    %c0_i32 = arith.constant 0 : i32
    %c0_i32_0 = arith.constant 0 : i32
    %c0_i32_1 = arith.constant 0 : i32
    return %c0_i32, %c0_i32_0 : i32, i32
  }
  func.func @transform_5(%arg0: i32, %arg1: i32) -> (i32, i32) {
    %c0_i32 = arith.constant 0 : i32
    %c0_i32_0 = arith.constant 0 : i32
    %c0_i32_1 = arith.constant 0 : i32
    return %c0_i32, %c0_i32_0 : i32, i32
  }
  func.func @transform_6(%arg0: i32, %arg1: i32) -> i32 {
    %c0_i32 = arith.constant 0 : i32
    %c0_i32_0 = arith.constant 0 : i32
    return %c0_i32 : i32
  }
  func.func @transform_7(%arg0: i32, %arg1: i32) -> (i32, i32, i32) {
    %c0_i32 = arith.constant 0 : i32
    %c0_i32_0 = arith.constant 0 : i32
    %c0_i32_1 = arith.constant 0 : i32
    return %arg0, %c0_i32, %c0_i32_0 : i32, i32, i32
  }
}

</mosaic_0001>

<llo_original>
// kernel: tpu_custom_call.1
$region0: #{tpu_custom_call.1}
  #allocation0 [shape = 'u32[]', space=smem, size = 0x4, offset = 0x4, fixed_abs, tag = 'smem constant byte address 0x4 - core index']
  #allocation1 [shape = 'u32[72,128]{1,0:T(1,128)}', space=vmem, size = 0x9000, scoped, tag = 'internal scratch']
  #allocation2 [shape = 'f32[1]{0:T(128)S(6)}', space=smem, size = 0x200, scoped, tag = 'scoped memory for tpu_custom_call.1']
  %s0 = inlined_call_operand.vmem [shape: f32[8,32], index: 0, kind: input, shape index: {}]
  %s1 = inlined_call_operand.hbm [shape: f32[8,32], index: 1, kind: input, shape index: {}]
  %s2 = inlined_call_operand.vmem [shape: f32[8,1], index: 2, kind: input, shape index: {}]
  %s3 = inlined_call_operand.vmem [shape: f32[1,32], index: 3, kind: input, shape index: {}]
  %s4 = inlined_call_operand.vmem [shape: f32[1,32], index: 4, kind: input, shape index: {}]
  %s5 = inlined_call_operand.vmem [shape: f32[1,32], index: 5, kind: input, shape index: {}]
  %s6 = inlined_call_operand.<no memory space> [shape: f32[1], index: 6, kind: input, shape index: {}]
  %s7 = inlined_call_operand.hbm [shape: f32[2,8,128], index: 7, kind: output, shape index: {}]
  %s8 = sld [smem:[#allocation0]]
  $region69: #{tpu_custom_call.1} parent=0
    _
  %s10 = ssub.s32 1, %s8
  %s11 = scalar_select 0, %s10, %s8
  %12 = sst [smem:[#allocation2]] %s6
  $region1: #{tpu_custom_call.1} parent=0
    #allocation3 [shape = 'u8[8192]{0}', space=vmem, size = 0x2000, scoped, tag = 'input window, operand 1']
    #allocation4 [shape = 's32[2]{0}', space=sflag, size = 0x8, scoped, tag = 'scoped memory for tpu_custom_call.1']
    #allocation5 [shape = 's32[2]{0}', space=sflag, size = 0x8, scoped, tag = 'scoped memory for tpu_custom_call.1']
    #allocation6 [shape = 'u8[8192]{0}', space=vmem, size = 0x2000, scoped, tag = 'output window, operand 0']
    %13 = vsyncpa [#allocation4], 0
    %s14 = scalar_lea.sflag [#allocation4], 1
    %15 = vsyncpa %s14, 0
    %16 = vsyncpa [#allocation5], 0
    %s17 = scalar_lea.sflag [#allocation5], 1
    %18 = vsyncpa %s17, 0
    loop: start=0, step=1, limit=4
    $region2: #{tpu_custom_call.1} parent=1 // loop_pre_header
      _
    $region3: #{tpu_custom_call.1} parent=1 // loop_header
      %s20 = sphi 0, %s24
      %p21 = scmp.ge.s32.totalorder %s20, 4
      %s27 = sphi 0, %s39
      %s28 = sphi 0, %s35
      %s29 = sphi 0, %s27
      %s30 = sphi 0, %s28
      %s31 = sphi 0, %s29
      %s32 = sphi 0, %s30
      %s48 = sphi 0, %s50
      %s51 = sphi 0, %s48
      %s52 = sphi 0, %s51
      %s68 = sphi 0, %s52
      %s80 = sphi 0, %s82
      %s83 = sphi 0, %s80
      %s84 = sphi 0, %s83
      %s100 = sphi 0, %s84
      %s112 = sphi 0, %s114
      %s115 = sphi 0, %s112
      %s116 = sphi 0, %s115
      %s132 = sphi 0, %s116
      %s136 = sphi 0, %s136
      %s138 = sphi 0, %s136
      %s139 = sphi 0, %s138
      %s153 = sphi 0, %s139
      %s157 = sphi 0, %s157
      %s159 = sphi 0, %s157
      %s160 = sphi 0, %s159
      %s174 = sphi 0, %s160
      %s178 = sphi 0, %s178
      %s180 = sphi 0, %s178
      %s181 = sphi 0, %s180
      %s195 = sphi 0, %s181
      %s199 = sphi 0, %s199
      %s201 = sphi 0, %s199
      %s202 = sphi 0, %s201
      %s216 = sphi 0, %s202
      %s222 = sphi 0, %s224
      %s225 = sphi 0, %s222
      %s226 = sphi 0, %s225
      %s242 = sphi 0, %s226
    $region4: #{tpu_custom_call.1} parent=1 // loop_header_branch
      %23 = sbr.rel (%p21) target = $region8
    $region5: #{tpu_custom_call.1} parent=1 // loop_body
      %s25 = ssub.s32 %s20, 1
      %s26 = ssub.s32 %s20, 2
      %s33 = sadd.s32 1, %s28
      %p34 = scmp.ge.s32.totalorder %s33, 1
      %s35 = scalar_select %p34, 0, %s33
      %s36 = sadd.s32 1, %s27
      %s37 = scalar_select %p34, %s36, %s27
      %p38 = scmp.ge.s32.totalorder %s37, 2
      %s39 = scalar_select %p38, 0, %s37
      %s40 = sadd.s32 %s27, %s28
      %p41 = scmp.lt.s32.totalorder %s40, 0
      %s42 = scalar_select %p41, %s40, 0
      %s43 = sadd.s32 %s39, %s35
      %p44 = scmp.lt.s32.totalorder %s43, 0
      %s45 = scalar_select %p44, %s43, 0
      %s46 = ssub.s32 %s42, %s45
      %p47 = scmp.eq.s32.totalorder %s46, 0
      %s49 = sadd.s32 %s48, 1
      %s50 = scalar_select %p47, %s48, %s49
      %p53 = pneg %p47
      %p54 = scmp.eq.s32.totalorder %s20, 1
      %p55 = por %p53, %p54
      %p56 = scmp.ne.s32.totalorder %s48, %s51
      %p57 = scmp.eq.s32.totalorder %s20, 0
      %p58 = por %p56, %p57
      %p59 = scmp.ne.s32.totalorder %s48, %s51
      %p60 = scmp.eq.s32.totalorder %s25, 1
      %p61 = por %p59, %p60
      %p62 = scmp.ne.s32.totalorder %s51, %s52
      %p63 = scmp.eq.s32.totalorder %s25, 0
      %p64 = por %p62, %p63
      %p65 = scmp.ne.s32.totalorder %s51, %s52
      %p66 = scmp.eq.s32.totalorder %s26, 1
      %p67 = por %p65, %p66
      %p69 = scmp.ne.s32.totalorder %s52, %s68
      %p70 = scmp.eq.s32.totalorder %s26, 0
      %p71 = por %p69, %p70
      %s72 = sadd.s32 %s27, %s28
      %p73 = scmp.lt.s32.totalorder %s72, 0
      %s74 = scalar_select %p73, %s72, 0
      %s75 = sadd.s32 %s39, %s35
      %p76 = scmp.lt.s32.totalorder %s75, 0
      %s77 = scalar_select %p76, %s75, 0
      %s78 = ssub.s32 %s74, %s77
      %p79 = scmp.eq.s32.totalorder %s78, 0
      %s81 = sadd.s32 %s80, 1
      %s82 = scalar_select %p79, %s80, %s81
      %p85 = pneg %p79
      %p86 = scmp.eq.s32.totalorder %s20, 1
      %p87 = por %p85, %p86
      %p88 = scmp.ne.s32.totalorder %s80, %s83
      %p89 = scmp.eq.s32.totalorder %s20, 0
      %p90 = por %p88, %p89
      %p91 = scmp.ne.s32.totalorder %s80, %s83
      %p92 = scmp.eq.s32.totalorder %s25, 1
      %p93 = por %p91, %p92
      %p94 = scmp.ne.s32.totalorder %s83, %s84
      %p95 = scmp.eq.s32.totalorder %s25, 0
      %p96 = por %p94, %p95
      %p97 = scmp.ne.s32.totalorder %s83, %s84
      %p98 = scmp.eq.s32.totalorder %s26, 1
      %p99 = por %p97, %p98
      %p101 = scmp.ne.s32.totalorder %s84, %s100
      %p102 = scmp.eq.s32.totalorder %s26, 0
      %p103 = por %p101, %p102
      %s104 = sadd.s32 %s27, %s28
      %p105 = scmp.lt.s32.totalorder %s104, 0
      %s106 = scalar_select %p105, %s104, 0
      %s107 = sadd.s32 %s39, %s35
      %p108 = scmp.lt.s32.totalorder %s107, 0
      %s109 = scalar_select %p108, %s107, 0
      %s110 = ssub.s32 %s106, %s109
      %p111 = scmp.eq.s32.totalorder %s110, 0
      %s113 = sadd.s32 %s112, 1
      %s114 = scalar_select %p111, %s112, %s113
      %p117 = pneg %p111
      %p118 = scmp.eq.s32.totalorder %s20, 1
      %p119 = por %p117, %p118
      %p120 = scmp.ne.s32.totalorder %s112, %s115
      %p121 = scmp.eq.s32.totalorder %s20, 0
      %p122 = por %p120, %p121
      %p123 = scmp.ne.s32.totalorder %s112, %s115
      %p124 = scmp.eq.s32.totalorder %s25, 1
      %p125 = por %p123, %p124
      %p126 = scmp.ne.s32.totalorder %s115, %s116
      %p127 = scmp.eq.s32.totalorder %s25, 0
      %p128 = por %p126, %p127
      %p129 = scmp.ne.s32.totalorder %s115, %s116
      %p130 = scmp.eq.s32.totalorder %s26, 1
      %p131 = por %p129, %p130
      %p133 = scmp.ne.s32.totalorder %s116, %s132
      %p134 = scmp.eq.s32.totalorder %s26, 0
      %p135 = por %p133, %p134
      %s137 = sadd.s32 %s136, 1
      %p140 = scmp.eq.s32.totalorder %s20, 1
      %p141 = scmp.ne.s32.totalorder %s136, %s138
      %p142 = scmp.eq.s32.totalorder %s20, 0
      %p143 = por %p141, %p142
      %p144 = scmp.ne.s32.totalorder %s136, %s138
      %p145 = scmp.eq.s32.totalorder %s25, 1
      %p146 = por %p144, %p145
      %p147 = scmp.ne.s32.totalorder %s138, %s139
      %p148 = scmp.eq.s32.totalorder %s25, 0
      %p149 = por %p147, %p148
      %p150 = scmp.ne.s32.totalorder %s138, %s139
      %p151 = scmp.eq.s32.totalorder %s26, 1
      %p152 = por %p150, %p151
      %p154 = scmp.ne.s32.totalorder %s139, %s153
      %p155 = scmp.eq.s32.totalorder %s26, 0
      %p156 = por %p154, %p155
      %s158 = sadd.s32 %s157, 1
      %p161 = scmp.eq.s32.totalorder %s20, 1
      %p162 = scmp.ne.s32.totalorder %s157, %s159
      %p163 = scmp.eq.s32.totalorder %s20, 0
      %p164 = por %p162, %p163
      %p165 = scmp.ne.s32.totalorder %s157, %s159
      %p166 = scmp.eq.s32.totalorder %s25, 1
      %p167 = por %p165, %p166
      %p168 = scmp.ne.s32.totalorder %s159, %s160
      %p169 = scmp.eq.s32.totalorder %s25, 0
      %p170 = por %p168, %p169
      %p171 = scmp.ne.s32.totalorder %s159, %s160
      %p172 = scmp.eq.s32.totalorder %s26, 1
      %p173 = por %p171, %p172
      %p175 = scmp.ne.s32.totalorder %s160, %s174
      %p176 = scmp.eq.s32.totalorder %s26, 0
      %p177 = por %p175, %p176
      %s179 = sadd.s32 %s178, 1
      %p182 = scmp.eq.s32.totalorder %s20, 1
      %p183 = scmp.ne.s32.totalorder %s178, %s180
      %p184 = scmp.eq.s32.totalorder %s20, 0
      %p185 = por %p183, %p184
      %p186 = scmp.ne.s32.totalorder %s178, %s180
      %p187 = scmp.eq.s32.totalorder %s25, 1
      %p188 = por %p186, %p187
      %p189 = scmp.ne.s32.totalorder %s180, %s181
      %p190 = scmp.eq.s32.totalorder %s25, 0
      %p191 = por %p189, %p190
      %p192 = scmp.ne.s32.totalorder %s180, %s181
      %p193 = scmp.eq.s32.totalorder %s26, 1
      %p194 = por %p192, %p193
      %p196 = scmp.ne.s32.totalorder %s181, %s195
      %p197 = scmp.eq.s32.totalorder %s26, 0
      %p198 = por %p196, %p197
      %s200 = sadd.s32 %s199, 1
      %p203 = scmp.eq.s32.totalorder %s20, 1
      %p204 = scmp.ne.s32.totalorder %s199, %s201
      %p205 = scmp.eq.s32.totalorder %s20, 0
      %p206 = por %p204, %p205
      %p207 = scmp.ne.s32.totalorder %s199, %s201
      %p208 = scmp.eq.s32.totalorder %s25, 1
      %p209 = por %p207, %p208
      %p210 = scmp.ne.s32.totalorder %s201, %s202
      %p211 = scmp.eq.s32.totalorder %s25, 0
      %p212 = por %p210, %p211
      %p213 = scmp.ne.s32.totalorder %s201, %s202
      %p214 = scmp.eq.s32.totalorder %s26, 1
      %p215 = por %p213, %p214
      %p217 = scmp.ne.s32.totalorder %s202, %s216
      %p218 = scmp.eq.s32.totalorder %s26, 0
      %p219 = por %p217, %p218
      %s220 = ssub.s32 %s27, %s39
      %p221 = scmp.eq.s32.totalorder %s220, 0
      %s223 = sadd.s32 %s222, 1
      %s224 = scalar_select %p221, %s222, %s223
      %p227 = pneg %p221
      %p228 = scmp.eq.s32.totalorder %s20, 1
      %p229 = por %p227, %p228
      %p230 = scmp.ne.s32.totalorder %s222, %s225
      %p231 = scmp.eq.s32.totalorder %s20, 0
      %p232 = por %p230, %p231
      %p233 = scmp.ne.s32.totalorder %s222, %s225
      %p234 = scmp.eq.s32.totalorder %s25, 1
      %p235 = por %p233, %p234
      %p236 = scmp.ne.s32.totalorder %s225, %s226
      %p237 = scmp.eq.s32.totalorder %s25, 0
      %p238 = por %p236, %p237
      %p239 = scmp.ne.s32.totalorder %s225, %s226
      %p240 = scmp.eq.s32.totalorder %s26, 1
      %p241 = por %p239, %p240
      %p243 = scmp.ne.s32.totalorder %s226, %s242
      %p244 = scmp.eq.s32.totalorder %s26, 0
      %p245 = por %p243, %p244
      %p246 = scmp.le.s32.totalorder 1, %s20
      %p247 = scmp.lt.s32.totalorder %s20, 3
      %p248 = pnand %p246, %p247
      %p249 = pneg %p248
      // Predicated region
      $region9: #{tpu_custom_call.1} parent=5 // pred_check
        _
      $region10: #{tpu_custom_call.1} parent=5 // pred_check_branch
        %251 = sbr.rel (%p248) target = $region12
      $region11: #{tpu_custom_call.1} parent=5 // pred_region
        %s252 = ssub.s32 %s20, 1
        // Predicated region
        $region13: #{tpu_custom_call.1} parent=11 // pred_check
          %p253 = pneg %p149
        $region14: #{tpu_custom_call.1} parent=11 // pred_check_branch
          %255 = sbr.rel (%p253) target = $region16
        $region15: #{tpu_custom_call.1} parent=11 // pred_region
          _
        $region16: #{tpu_custom_call.1} parent=11 // pred_fallthru
          _
        // Predicated region
        $region17: #{tpu_custom_call.1} parent=11 // pred_check
          %p256 = pneg %p170
        $region18: #{tpu_custom_call.1} parent=11 // pred_check_branch
          %258 = sbr.rel (%p256) target = $region20
        $region19: #{tpu_custom_call.1} parent=11 // pred_region
          _
        $region20: #{tpu_custom_call.1} parent=11 // pred_fallthru
          _
        // Predicated region
        $region21: #{tpu_custom_call.1} parent=11 // pred_check
          %p259 = pneg %p191
        $region22: #{tpu_custom_call.1} parent=11 // pred_check_branch
          %261 = sbr.rel (%p259) target = $region24
        $region23: #{tpu_custom_call.1} parent=11 // pred_region
          _
        $region24: #{tpu_custom_call.1} parent=11 // pred_fallthru
          _
        // Predicated region
        $region25: #{tpu_custom_call.1} parent=11 // pred_check
          %p262 = pneg %p212
        $region26: #{tpu_custom_call.1} parent=11 // pred_check_branch
          %264 = sbr.rel (%p262) target = $region28
        $region27: #{tpu_custom_call.1} parent=11 // pred_region
          _
        $region28: #{tpu_custom_call.1} parent=11 // pred_fallthru
          _
      $region12: #{tpu_custom_call.1} parent=5 // pred_fallthru
        _
      %p265 = scmp.lt.s32.totalorder %s20, 2
      // Predicated region
      $region29: #{tpu_custom_call.1} parent=5 // pred_check
        %p266 = pneg %p265
      $region30: #{tpu_custom_call.1} parent=5 // pred_check_branch
        %268 = sbr.rel (%p266) target = $region32
      $region31: #{tpu_custom_call.1} parent=5 // pred_region
        // Predicated region
        $region33: #{tpu_custom_call.1} parent=31 // pred_check
          %p269 = pneg %p58
        $region34: #{tpu_custom_call.1} parent=31 // pred_check_branch
          %271 = sbr.rel (%p269) target = $region36
        $region35: #{tpu_custom_call.1} parent=31 // pred_region
          %s272 = sadd.s32 %s27, %s28
          %p273 = scmp.lt.s32.totalorder %s272, 0
          %s274 = scalar_select %p273, %s272, 0
          %p275 = scmp.lt.s32.totalorder %s274, 0
          %s276 = scalar_select %p275, %s274, 0
          %s277 = smul.addr %s276, 8
          %s278 = scalar_lea.vmem %s0, %s277
          %s279 = sadd.s32 %s27, %s28
          %p280 = scmp.lt.s32.totalorder %s279, 0
          %s281 = scalar_select %p280, %s279, 0
        $region36: #{tpu_custom_call.1} parent=31 // pred_fallthru
          _
        // Predicated region
        $region37: #{tpu_custom_call.1} parent=31 // pred_check
          %p282 = pneg %p90
        $region38: #{tpu_custom_call.1} parent=31 // pred_check_branch
          %284 = sbr.rel (%p282) target = $region40
        $region39: #{tpu_custom_call.1} parent=31 // pred_region
          %s285 = sand.u32 %s80, 1
          %s286 = scalar_lea.sflag [#allocation4], %s285
          %s287 = sand.u32 %s80, 1
          %s288 = smul.addr %s287, 8
          %s289 = scalar_lea.vmem [#allocation3], %s288
          %s290 = sadd.s32 %s27, %s28
          %p291 = scmp.lt.s32.totalorder %s290, 0
          %s292 = scalar_select %p291, %s290, 0
          %294 = vsyncadd %s286, 0
          %s295 = smul.addr %s292, 8
          %s296 = scalar_lea.hbm %s1, %s295
          %s298 = sshll.u32 %s296, 4
          %s299 = int_to_ptr.hbm [resolvable:$true] %s298
          %s300 = sshll.u32 %s289, 4
          %s301 = int_to_ptr.vmem [resolvable:$true] %s300
          %303 = dma.hbm_to_vmem [thread:$0]  %s299, 128, %s301, %s286
        $region40: #{tpu_custom_call.1} parent=31 // pred_fallthru
          _
        // Predicated region
        $region41: #{tpu_custom_call.1} parent=31 // pred_check
          %p304 = pneg %p122
        $region42: #{tpu_custom_call.1} parent=31 // pred_check_branch
          %306 = sbr.rel (%p304) target = $region44
        $region43: #{tpu_custom_call.1} parent=31 // pred_region
          %s307 = sadd.s32 %s27, %s28
          %p308 = scmp.lt.s32.totalorder %s307, 0
          %s309 = scalar_select %p308, %s307, 0
          %p310 = scmp.lt.s32.totalorder %s309, 0
          %s311 = scalar_select %p310, %s309, 0
          %s312 = smul.addr %s311, 8
          %s313 = scalar_lea.vmem %s2, %s312
          %s314 = sadd.s32 %s27, %s28
          %p315 = scmp.lt.s32.totalorder %s314, 0
          %s316 = scalar_select %p315, %s314, 0
        $region44: #{tpu_custom_call.1} parent=31 // pred_fallthru
          _
      $region32: #{tpu_custom_call.1} parent=5 // pred_fallthru
        _
      %p317 = scmp.le.s32.totalorder 1, %s20
      %p318 = scmp.lt.s32.totalorder %s20, 3
      %p319 = pnand %p317, %p318
      %p320 = pneg %p319
      // Predicated region
      $region45: #{tpu_custom_call.1} parent=5 // pred_check
        _
      $region46: #{tpu_custom_call.1} parent=5 // pred_check_branch
        %322 = sbr.rel (%p319) target = $region48
      $region47: #{tpu_custom_call.1} parent=5 // pred_region
        %s323 = ssub.s32 %s20, 1
        %s324 = sand.u32 %s83, 1
        %s325 = scalar_lea.sflag [#allocation4], %s324
        %s326 = sand.u32 %s83, 1
        %s327 = smul.addr %s326, 8
        %s328 = scalar_lea.vmem [#allocation3], %s327
        // Predicated region
        $region49: #{tpu_custom_call.1} parent=47 // pred_check
          %p329 = pneg %p96
        $region50: #{tpu_custom_call.1} parent=47 // pred_check_branch
          %331 = sbr.rel (%p329) target = $region52
        $region51: #{tpu_custom_call.1} parent=47 // pred_region
          %333 = dma.done %s325, 128
        $region52: #{tpu_custom_call.1} parent=47 // pred_fallthru
          _
        %s334 = sadd.s32 %s29, %s30
        %p335 = scmp.lt.s32.totalorder %s334, 0
        %s336 = scalar_select %p335, %s334, 0
        %p337 = scmp.lt.s32.totalorder %s336, 0
        %s338 = scalar_select %p337, %s336, 0
        %s339 = smul.addr %s338, 8
        %s340 = scalar_lea.vmem %s0, %s339
        %p341 = pneg %p64
        %p342 = pneg %p61
        %s343 = sand.u32 %s83, 1
        %s344 = scalar_lea.sflag [#allocation4], %s343
        %s345 = sand.u32 %s83, 1
        %s346 = smul.addr %s345, 8
        %s347 = scalar_lea.vmem [#allocation3], %s346
        %p348 = pneg %p96
        %p349 = pneg %p93
        %s350 = sadd.s32 %s29, %s30
        %p351 = scmp.lt.s32.totalorder %s350, 0
        %s352 = scalar_select %p351, %s350, 0
        %p353 = scmp.lt.s32.totalorder %s352, 0
        %s354 = scalar_select %p353, %s352, 0
        %s355 = smul.addr %s354, 8
        %s356 = scalar_lea.vmem %s2, %s355
        %p357 = pneg %p128
        %p358 = pneg %p125
        %p359 = pneg %p149
        %p360 = pneg %p146
        %p361 = pneg %p170
        %p362 = pneg %p167
        %p363 = pneg %p191
        %p364 = pneg %p188
        %p365 = pneg %p212
        %p366 = pneg %p209
        %p367 = pneg %p238
        %p368 = pneg %p235
        %s369 = sand.u32 %s225, 1
        %s370 = scalar_lea.sflag [#allocation5], %s369
        %s371 = sand.u32 %s225, 1
        %s372 = smul.addr %s371, 8
        %s373 = scalar_lea.vmem [#allocation6], %s372
        %s374 = sadd.s32 %s29, %s30
        %p375 = scmp.lt.s32.totalorder %s374, 0
        %s376 = scalar_select %p375, %s374, 0
        %p377 = scmp.lt.s32.totalorder %s376, 0
        %s378 = scalar_select %p377, %s376, 0
        %s379 = smul.addr %s378, 8
        %s380 = scalar_lea.vmem %s0, %s379
        %s381 = sadd.s32 %s29, %s30
        %p382 = scmp.lt.s32.totalorder %s381, 0
        %s383 = scalar_select %p382, %s381, 0
        %s384 = sadd.s32 %s29, %s30
        %p385 = scmp.lt.s32.totalorder %s384, 0
        %s386 = scalar_select %p385, %s384, 0
        %s387 = sadd.s32 %s29, %s30
        %p388 = scmp.lt.s32.totalorder %s387, 0
        %s389 = scalar_select %p388, %s387, 0
        %p390 = scmp.lt.s32.totalorder %s389, 0
        %s391 = scalar_select %p390, %s389, 0
        %s392 = smul.addr %s391, 8
        %s393 = scalar_lea.vmem %s2, %s392
        %s394 = sadd.s32 %s29, %s30
        %p395 = scmp.lt.s32.totalorder %s394, 0
        %s396 = scalar_select %p395, %s394, 0
        %p397 = scmp.eq.s32.totalorder %s30, 0
        // Predicated region
        $region53: #{tpu_custom_call.1} parent=47 // pred_check
          %p398 = pneg %p397
        $region54: #{tpu_custom_call.1} parent=47 // pred_check_branch
          %400 = sbr.rel (%p398) target = $region56
        $region55: #{tpu_custom_call.1} parent=47 // pred_region
          %401 = vst [vmem:[%s373] sm:$0xff] 0.0
        $region56: #{tpu_custom_call.1} parent=47 // pred_fallthru
          _
        %v402 = vld [vmem:[%s380] sm:$0xff]
        %v403 = vld [vmem:[%s328] sm:$0xff]
        %v404 = vld [vmem:[%s3] sm:$0x1]
        %v405 = vld [vmem:[%s4] sm:$0x1]
        %v406 = vld [vmem:[%s5] sm:$0x1]
        %v408 = vperm.slane %v404, 0
        %v410 = vmul.f32 %v402, %v408
        %v412 = vperm.slane %v405, 0
        %v414 = vmul.f32 %v403, %v412
        %v415 = vadd.f32 %v410, %v414
        %v416 = vsub.f32 %v402, %v403
        %v417 = vand.u32 2147483647, %v416
        %v419 = vperm.slane %v406, 0
        %v421 = vmul.f32 %v417, %v419
        %v422 = vadd.f32 %v415, %v421
        %vm423 = vcmask 261120
        %v424 = vsel %vm423, %v422, 0.0
        %425 = vadd.xlane.f32.xlu0 %v424
        %v426 = vpop.xlane.xlu0 %425
        %s427 = sld [smem:[#allocation2]]
        %v428 = vstv %s427
        %v429 = vadd.f32 %v426, %v428
        %v430 = vld [vmem:[%s393] sm:$0xff]
        %v431 = vmax.f32 %v429, 0.0
        %v432 = vmul.f32 %v429, %v430
        %v433 = vsub.f32 %v431, %v432
        %v434 = vand.u32 2147483647, %v429
        %v435 = vsub.f32 0.0, %v434
        %v436 = vmul.f32 %v435, 1.442695
        %v437 = vpow.pop %v436
        %v438 = vadd.f32 %v437, 1.0
        %v439 = vlog2.pop %v438
        %v440 = vmul.f32 %v439, 0.6931472
        %v441 = vmul.f32 -0.5, %v437
        %v442 = vadd.f32 %v441, 1.0
        %v443 = vmul.f32 %v442, %v437
        %v444 = vand.u32 2147483647, %v437
        %vm445 = vcmp.lt.f32.partialorder %v444, 0.0004427343
        %v446 = vsel %vm445, %v443, %v440
        %v447 = vadd.f32 %v433, %v446
        %s448 = sadd.s32 %s29, %s30
        %s449 = smul.u32 %s448, 8
        %v450 = vlaneseq
        %v451 = vshrl.u32 %v450, 7
        %v452 = vstv %s449
        %v453 = vadd.s32 %v452, %v451
        %vm454 = vcmp.lt.s32.totalorder %v453, 8
        %v455 = vsel %vm454, %v447, 0.0
        %v456 = vld [vmem:[%s373] sm:$0xff]
        %vm457 = vcmask 7168
        %v458 = vsel %vm457, %v455, 0.0
        %459 = vadd.xlane.f32.xlu0 %v458
        %v460 = vpop.xlane.xlu0 %459
        %v461 = vrot.slane %v460, 4
        %v462 = vadd.f32 %v460, %v461
        %v463 = vrot.slane %v462, 2
        %v464 = vadd.f32 %v462, %v463
        %v465 = vrot.slane %v464, 1
        %v466 = vadd.f32 %v464, %v465
        %s467 = vtos %v466
        %v468 = vstv %s467
        %v469 = vadd.f32 %v456, %v468
        %470 = vst [vmem:[%s373] sm:$0xff] %v469
        %s471 = sand.u32 %s225, 1
        %s472 = scalar_lea.sflag [#allocation5], %s471
        %s473 = sand.u32 %s225, 1
        %s474 = smul.addr %s473, 8
        %s475 = scalar_lea.vmem [#allocation6], %s474
        // Predicated region
        $region57: #{tpu_custom_call.1} parent=47 // pred_check
          %p476 = pneg %p235
        $region58: #{tpu_custom_call.1} parent=47 // pred_check_branch
          %478 = sbr.rel (%p476) target = $region60
        $region59: #{tpu_custom_call.1} parent=47 // pred_region
          %480 = vsyncadd %s472, 0
          %s481 = smul.addr %s29, 8
          %s482 = scalar_lea.hbm %s7, %s481
          %s484 = sshll.u32 %s475, 4
          %s485 = int_to_ptr.vmem [resolvable:$true] %s484
          %s486 = sshll.u32 %s482, 4
          %s487 = int_to_ptr.hbm [resolvable:$true] %s486
          %489 = dma.vmem_to_hbm [thread:$0]  %s485, 128, %s487, %s472
        $region60: #{tpu_custom_call.1} parent=47 // pred_fallthru
          _
      $region48: #{tpu_custom_call.1} parent=5 // pred_fallthru
        _
      %p490 = scmp.le.s32.totalorder 2, %s20
      // Predicated region
      $region61: #{tpu_custom_call.1} parent=5 // pred_check
        %p491 = pneg %p490
      $region62: #{tpu_custom_call.1} parent=5 // pred_check_branch
        %493 = sbr.rel (%p491) target = $region64
      $region63: #{tpu_custom_call.1} parent=5 // pred_region
        %s494 = ssub.s32 %s20, 2
        // Predicated region
        $region65: #{tpu_custom_call.1} parent=63 // pred_check
          %p495 = pneg %p241
        $region66: #{tpu_custom_call.1} parent=63 // pred_check_branch
          %497 = sbr.rel (%p495) target = $region68
        $region67: #{tpu_custom_call.1} parent=63 // pred_region
          %s498 = sand.u32 %s226, 1
          %s499 = scalar_lea.sflag [#allocation5], %s498
          %s500 = sand.u32 %s226, 1
          %s501 = smul.addr %s500, 8
          %s502 = scalar_lea.vmem [#allocation6], %s501
          %504 = dma.done %s499, 128
        $region68: #{tpu_custom_call.1} parent=63 // pred_fallthru
          _
      $region64: #{tpu_custom_call.1} parent=5 // pred_fallthru
        _
    $region6: #{tpu_custom_call.1} parent=1 // loop_footer
      %s24 = sadd.s32 1, %s20
    $region7: #{tpu_custom_call.1} parent=1 // loop_footer_branch
      %19 = sbr.rel target = $region3
    $region8: #{tpu_custom_call.1} parent=1 // loop_exit
      _
    %505 = vsyncpa [#allocation4], 1
    %s506 = scalar_lea.sflag [#allocation4], 1
    %507 = vsyncpa %s506, 1
    %508 = vsyncpa [#allocation5], 1
    %s509 = scalar_lea.sflag [#allocation5], 1
    %510 = vsyncpa %s509, 1

</llo_original>
